<compile_context>
chip_gen: v5e
topology: v5e:2x2
jax: 0.10.0
libtpu: 0.0.40
codegen_flags: <defaults>
</compile_context>

<pallas_src>
import jax
import jax.numpy as jnp
from jax.experimental import pallas as pl
from jax.experimental.pallas import tpu as pltpu

EPS_LN = 1e-5          # torch F.layer_norm default eps
_OUT_PAD = 8           # f score (1) + v offsets (2), zero-padded to 8 output columns


def _target_predictor_kernel(tp_ref, x_ref, w1x_ref, w1tp_ref, b1_ref,
                             w2_ref, b2_ref, pi_ref, vt_ref):
    """One grid step = B_blk batch items, R = B_blk * N rows.

    tp_ref  : (R, 2)     f32   target-point channels
    x_ref   : (R, Cx)    bf16  scene-context features
    w1x_ref : (Cx, 2H)   bf16  fused first-layer weight [w1_f | w1_v] (x rows)
    w1tp_ref: (2, 2H)    f32   fused first-layer weight (target-point rows)
    b1_ref  : (1, 2H)    f32   fused first-layer bias
    w2_ref  : (2H, 8)    bf16  block-diag second-layer weight [[w2_f,0],[0,w2_v]] + pad
    b2_ref  : (1, 8)     f32   fused second-layer bias (padded)
    pi_ref  : (B, 1, N)  f32   per-batch log-softmax over the N targets (lane-dense)
    vt_ref  : (B, 2, N)  f32   offsets, transposed (lane-dense)
    """
    B_blk, _, N = pi_ref.shape
    H = w1x_ref.shape[1] // 2
    P = w2_ref.shape[1]

    # ---- fused first layer for both heads: MXU matmul + VPU FMAs (no concat) ----
    h = jnp.dot(x_ref[...], w1x_ref[...], preferred_element_type=jnp.float32)  # (R, 2H)
    tp = tp_ref[...]
    w1tp = w1tp_ref[...]
    h = h + tp[:, 0:1] * w1tp[0:1, :] + tp[:, 1:2] * w1tp[1:2, :] + b1_ref[...]

    # ---- per-head LayerNorm (no affine, biased var, eps=1e-5) + ReLU, in f32 ----
    def ln_relu(a):
        mu = jnp.mean(a, axis=-1, keepdims=True)
        var = jnp.mean(jnp.square(a - mu), axis=-1, keepdims=True)
        return jnp.maximum((a - mu) * jax.lax.rsqrt(var + EPS_LN), 0.0)

    hr = jnp.concatenate([ln_relu(h[:, :H]), ln_relu(h[:, H:])], axis=-1)       # (R, 2H)

    # ---- fused block-diagonal second layer: one (R, 2H) @ (2H, 8) matmul ----
    out = jnp.dot(hr.astype(jnp.bfloat16), w2_ref[...],
                  preferred_element_type=jnp.float32) + b2_ref[...]             # (R, 8)

    # ---- lane-dense finalization: (B, N, 8) -> (B, 8, N) via the XLU ----
    out_t = jnp.swapaxes(out.reshape(B_blk, N, P), 1, 2)                        # (B, 8, N)

    # f head -> numerically stable log_softmax over the N targets (lane axis).
    s = out_t[:, 0:1, :]                                                        # (B, 1, N)
    m = jnp.max(s, axis=-1, keepdims=True)
    z = s - m
    lse = jnp.log(jnp.sum(jnp.exp(z), axis=-1, keepdims=True))
    pi_ref[...] = z - lse

    # v head.
    vt_ref[...] = out_t[:, 1:3, :]


def _pick_batch_block(bs, N, target):
    """Largest divisor of bs that is <= target and keeps partial row blocks 16-aligned."""
    best = 1
    for d in range(1, bs + 1):
        if bs % d == 0 and d <= target and (d == bs or (d * N) % 16 == 0):
            best = d
    return best


def target_predictor_forward(target_point, x, params, *, batch_block=16):
    """target_point: (bs, N, 2), x: (bs, N, Cx) -> (out_pi (bs, N), v_x (bs, N, 2))."""
    assert target_point.ndim == 3 and x.ndim == 3
    assert target_point.shape[1] == x.shape[1]
    bs, N, Cx = x.shape
    assert N % 8 == 0, "N must be a multiple of 8 (TPU sublane tiling)"
    H = params["w1_f"].shape[1]

    # batch_block is the per-generation tuning knob (<=32 on v7x f32, up to ~64 on v5e/v6e).
    B_blk = _pick_batch_block(bs, N, batch_block)
    R_blk = B_blk * N

    # ---- fuse the two heads' parameters (tiny one-off XLA ops) ----
    w1 = jnp.concatenate([params["w1_f"], params["w1_v"]], axis=1)    # (2+Cx, 2H)
    b1 = jnp.concatenate([params["b1_f"], params["b1_v"]], axis=1)    # (1, 2H) f32
    w1_tp = w1[:2, :].astype(jnp.float32)                             # (2, 2H)
    w1_x = w1[2:, :].astype(jnp.bfloat16)                             # (Cx, 2H)

    w2 = jnp.zeros((2 * H, _OUT_PAD), jnp.float32)
    w2 = w2.at[:H, 0:1].set(params["w2_f"])
    w2 = w2.at[H:, 1:3].set(params["w2_v"])
    w2 = w2.astype(jnp.bfloat16)                                      # (2H, 8)
    b2 = jnp.zeros((1, _OUT_PAD), jnp.float32)
    b2 = b2.at[:, 0:1].set(params["b2_f"])
    b2 = b2.at[:, 1:3].set(params["b2_v"])                            # (1, 8) f32

    # ---- flatten rows in HBM (free, row-major) and cast the big operand to bf16 ----
    x_flat = x.reshape(bs * N, Cx).astype(jnp.bfloat16)
    tp_flat = target_point.reshape(bs * N, 2).astype(jnp.float32)

    full = lambda arr: pl.BlockSpec(arr.shape, lambda i: (0,) * arr.ndim)

    cost = pl.CostEstimate(
        flops=2 * bs * N * (Cx * 2 * H + 2 * H * _OUT_PAD) + 8 * bs * N * H,
        transcendentals=3 * bs * N,
        bytes_accessed=(x_flat.size * 2 + tp_flat.size * 4
                        + bs * N * 4 + bs * N * 2 * 4
                        + w1_x.size * 2 + w2.size * 2
                        + (w1_tp.size + b1.size + b2.size) * 4),
    )

    pi3, v_t = pl.pallas_call(
        _target_predictor_kernel,
        out_shape=(
            jax.ShapeDtypeStruct((bs, 1, N), jnp.float32),
            jax.ShapeDtypeStruct((bs, 2, N), jnp.float32),
        ),
        grid_spec=pltpu.PrefetchScalarGridSpec(
            num_scalar_prefetch=0,
            grid=(bs // B_blk,),
            in_specs=[
                pl.BlockSpec((R_blk, 2), lambda i: (i, 0)),
                pl.BlockSpec((R_blk, Cx), lambda i: (i, 0)),
                full(w1_x), full(w1_tp), full(b1), full(w2), full(b2),
            ],
            out_specs=[
                pl.BlockSpec((B_blk, 1, N), lambda i: (i, 0, 0)),
                pl.BlockSpec((B_blk, 2, N), lambda i: (i, 0, 0)),
            ],
        ),
        compiler_params=pltpu.CompilerParams(
            dimension_semantics=("parallel",),
            vmem_limit_bytes=48 * 1024 * 1024,
        ),
        cost_estimate=cost,
    )(tp_flat, x_flat, w1_x, w1_tp, b1, w2, b2)

    out_pi = pi3.reshape(bs, N)            # free metadata reshape
    v_x = jnp.swapaxes(v_t, 1, 2)          # tiny (bs, 2, N) -> (bs, N, 2) transpose
    return out_pi, v_x


def _reference_forward(target_point, x, params):
    """Pure-JAX f32 reference mirroring the PyTorch module exactly."""
    inp = jnp.concatenate([target_point, x], axis=-1)

    def mlp(h_in, w1, b1, w2, b2):
        h = h_in @ w1 + b1
        mu = jnp.mean(h, axis=-1, keepdims=True)
        var = jnp.mean((h - mu) ** 2, axis=-1, keepdims=True)
        h = jnp.maximum((h - mu) / jnp.sqrt(var + EPS_LN), 0.0)
        return h @ w2 + b2

    f_x = mlp(inp, params["w1_f"], params["b1_f"],
              params["w2_f"], params["b2_f"])[..., 0]          # (bs, N)
    out_pi = jax.nn.log_softmax(f_x, axis=-1)
    v_x = mlp(inp, params["w1_v"], params["b1_v"],
              params["w2_v"], params["b2_v"])                  # (bs, N, 2)
    return out_pi, v_x


def init_params(key, input_channels=66, hidden=64):
    ks = jax.random.split(key, 8)
    s = 0.05
    return {
        # f head: 66 -> 64 -> 1
        "w1_f": s * jax.random.normal(ks[0], (input_channels, hidden), jnp.float32),
        "b1_f": s * jax.random.normal(ks[1], (1, hidden), jnp.float32),
        "w2_f": s * jax.random.normal(ks[2], (hidden, 1), jnp.float32),
        "b2_f": s * jax.random.normal(ks[3], (1, 1), jnp.float32),
        # v head: 66 -> 64 -> 2
        "w1_v": s * jax.random.normal(ks[4], (input_channels, hidden), jnp.float32),
        "b1_v": s * jax.random.normal(ks[5], (1, hidden), jnp.float32),
        "w2_v": s * jax.random.normal(ks[6], (hidden, 2), jnp.float32),
        "b2_v": s * jax.random.normal(ks[7], (1, 2), jnp.float32),
    }


if __name__ == "__main__":
    key = jax.random.PRNGKey(0)
    k_params, k_data = jax.random.split(key)
    params = init_params(k_params)

    def check(bs, N, batch_block):
        k1, k2 = jax.random.split(jax.random.fold_in(k_data, bs))
        tp = jax.random.normal(k1, (bs, N, 2), jnp.float32)
        xx = jax.random.normal(k2, (bs, N, 64), jnp.float32)

        out_pi, v_x = target_predictor_forward(tp, xx, params, batch_block=batch_block)
        out_pi = jax.block_until_ready(out_pi)
        v_x = jax.block_until_ready(v_x)

        ref_pi, ref_v = _reference_forward(tp, xx, params)
        assert out_pi.shape == (bs, N) and v_x.shape == (bs, N, 2)
        # bf16 matmul operands (f32 accumulation) -> small numeric drift vs f32 reference.
        assert jnp.allclose(out_pi, ref_pi, atol=2e-2, rtol=2e-2), \
            float(jnp.max(jnp.abs(out_pi - ref_pi)))
        assert jnp.allclose(v_x, ref_v, atol=2e-2, rtol=2e-2), \
            float(jnp.max(jnp.abs(v_x - ref_v)))
        # softmax math runs in f32 in-kernel -> probabilities must normalize exactly.
        assert jnp.allclose(jnp.exp(out_pi).sum(-1), 1.0, atol=1e-3)

    # small shapes consistent with the module (default N=1000 works identically, N % 8 == 0)
    check(bs=2, N=16, batch_block=16)   # single grid step (B_blk == bs)
    check(bs=4, N=16, batch_block=2)    # multi-step grid, batch-blocked (B_blk < bs)
    print("KERNEL_OK")
</pallas_src>

<mosaic_0001>
module attributes {stable_mosaic.version = 11 : i64} {
  func.func @_target_predictor_kernel(%arg0: i32, %arg1: memref<32x2xf32, #tpu.memory_space<vmem>>, %arg2: memref<32x64xbf16, #tpu.memory_space<vmem>>, %arg3: memref<64x128xbf16, #tpu.memory_space<vmem>>, %arg4: memref<2x128xf32, #tpu.memory_space<vmem>>, %arg5: memref<1x128xf32, #tpu.memory_space<vmem>>, %arg6: memref<128x8xbf16, #tpu.memory_space<vmem>>, %arg7: memref<1x8xf32, #tpu.memory_space<vmem>>, %arg8: memref<2x1x16xf32, #tpu.memory_space<vmem>>, %arg9: memref<2x2x16xf32, #tpu.memory_space<vmem>>) attributes {dimension_semantics = [#tpu.dimension_semantics<parallel>], iteration_bounds = array<i64: 1>, scalar_prefetch = 0 : i64, scratch_operands = 0 : i64, tpu.core_type = #tpu.core_type<tc>, window_params = [{transform_indices = @transform_0, window_bounds = array<i64: 32, 2>}, {transform_indices = @transform_1, window_bounds = array<i64: 32, 64>}, {pipeline_mode = #tpu.pipeline_mode<synchronous>, transform_indices = @transform_2, window_bounds = array<i64: 64, 128>}, {pipeline_mode = #tpu.pipeline_mode<synchronous>, transform_indices = @transform_3, window_bounds = array<i64: 2, 128>}, {pipeline_mode = #tpu.pipeline_mode<synchronous>, transform_indices = @transform_4, window_bounds = array<i64: 1, 128>}, {pipeline_mode = #tpu.pipeline_mode<synchronous>, transform_indices = @transform_5, window_bounds = array<i64: 128, 8>}, {pipeline_mode = #tpu.pipeline_mode<synchronous>, transform_indices = @transform_6, window_bounds = array<i64: 1, 8>}, {transform_indices = @transform_7, window_bounds = array<i64: 2, 1, 16>}, {transform_indices = @transform_8, window_bounds = array<i64: 2, 2, 16>}]} {
    %c0 = arith.constant 0 : index
    %c0_0 = arith.constant 0 : index
    %0 = vector.load %arg2[%c0, %c0_0] : memref<32x64xbf16, #tpu.memory_space<vmem>>, vector<32x64xbf16>
    %c0_1 = arith.constant 0 : index
    %c0_2 = arith.constant 0 : index
    %1 = vector.load %arg3[%c0_1, %c0_2] : memref<64x128xbf16, #tpu.memory_space<vmem>>, vector<64x128xbf16>
    %cst = arith.constant dense<0.000000e+00> : vector<32x128xf32>
    %2 = tpu.matmul %0, %1, %cst {dimension_numbers = #tpu.dot_dimension_numbers<[1], [0], [0], [1], [0, 0, 1, 1], [], []>} : vector<32x64xbf16>, vector<64x128xbf16>, vector<32x128xf32> -> vector<32x128xf32>
    %c0_3 = arith.constant 0 : index
    %c0_4 = arith.constant 0 : index
    %3 = vector.load %arg1[%c0_3, %c0_4] : memref<32x2xf32, #tpu.memory_space<vmem>>, vector<32x2xf32>
    %c0_5 = arith.constant 0 : index
    %c0_6 = arith.constant 0 : index
    %4 = vector.load %arg4[%c0_5, %c0_6] : memref<2x128xf32, #tpu.memory_space<vmem>>, vector<2x128xf32>
    %5 = vector.extract_strided_slice %3 {offsets = [0, 0], sizes = [32, 1], strides = [1, 1]} : vector<32x2xf32> to vector<32x1xf32>
    %6 = vector.extract_strided_slice %4 {offsets = [0, 0], sizes = [1, 128], strides = [1, 1]} : vector<2x128xf32> to vector<1x128xf32>
    %7 = vector.broadcast %5 : vector<32x1xf32> to vector<32x128xf32>
    %8 = vector.broadcast %6 : vector<1x128xf32> to vector<32x128xf32>
    %9 = arith.mulf %7, %8 : vector<32x128xf32>
    %10 = arith.addf %2, %9 : vector<32x128xf32>
    %11 = vector.extract_strided_slice %3 {offsets = [0, 1], sizes = [32, 1], strides = [1, 1]} : vector<32x2xf32> to vector<32x1xf32>
    %12 = vector.extract_strided_slice %4 {offsets = [1, 0], sizes = [1, 128], strides = [1, 1]} : vector<2x128xf32> to vector<1x128xf32>
    %13 = vector.broadcast %11 : vector<32x1xf32> to vector<32x128xf32>
    %14 = vector.broadcast %12 : vector<1x128xf32> to vector<32x128xf32>
    %15 = arith.mulf %13, %14 : vector<32x128xf32>
    %16 = arith.addf %10, %15 : vector<32x128xf32>
    %c0_7 = arith.constant 0 : index
    %c0_8 = arith.constant 0 : index
    %17 = vector.load %arg5[%c0_7, %c0_8] : memref<1x128xf32, #tpu.memory_space<vmem>>, vector<1x128xf32>
    %18 = vector.broadcast %17 : vector<1x128xf32> to vector<32x128xf32>
    %19 = arith.addf %16, %18 : vector<32x128xf32>
    %20 = vector.extract_strided_slice %19 {offsets = [0, 0], sizes = [32, 64], strides = [1, 1]} : vector<32x128xf32> to vector<32x64xf32>
    %cst_9 = arith.constant dense<0.000000e+00> : vector<32xf32>
    %21 = vector.multi_reduction <add>, %20, %cst_9 [1] : vector<32x64xf32> to vector<32xf32>
    %22 = vector.shape_cast %21 : vector<32xf32> to vector<32x1xf32>
    %cst_10 = arith.constant 6.400000e+01 : f32
    %23 = vector.broadcast %cst_10 : f32 to vector<32x1xf32>
    %24 = arith.divf %22, %23 : vector<32x1xf32>
    %25 = vector.broadcast %24 : vector<32x1xf32> to vector<32x64xf32>
    %26 = arith.subf %20, %25 : vector<32x64xf32>
    %27 = arith.mulf %26, %26 : vector<32x64xf32>
    %cst_11 = arith.constant dense<0.000000e+00> : vector<32xf32>
    %28 = vector.multi_reduction <add>, %27, %cst_11 [1] : vector<32x64xf32> to vector<32xf32>
    %29 = vector.shape_cast %28 : vector<32xf32> to vector<32x1xf32>
    %cst_12 = arith.constant 6.400000e+01 : f32
    %30 = vector.broadcast %cst_12 : f32 to vector<32x1xf32>
    %31 = arith.divf %29, %30 : vector<32x1xf32>
    %32 = vector.broadcast %24 : vector<32x1xf32> to vector<32x64xf32>
    %33 = arith.subf %20, %32 : vector<32x64xf32>
    %cst_13 = arith.constant 9.99999974E-6 : f32
    %34 = vector.broadcast %cst_13 : f32 to vector<32x1xf32>
    %35 = arith.addf %31, %34 : vector<32x1xf32>
    %36 = math.rsqrt %35 : vector<32x1xf32>
    %37 = vector.broadcast %36 : vector<32x1xf32> to vector<32x64xf32>
    %38 = arith.mulf %33, %37 : vector<32x64xf32>
    %cst_14 = arith.constant 0.000000e+00 : f32
    %39 = vector.broadcast %cst_14 : f32 to vector<32x64xf32>
    %40 = arith.maximumf %38, %39 : vector<32x64xf32>
    %41 = vector.extract_strided_slice %19 {offsets = [0, 64], sizes = [32, 64], strides = [1, 1]} : vector<32x128xf32> to vector<32x64xf32>
    %cst_15 = arith.constant dense<0.000000e+00> : vector<32xf32>
    %42 = vector.multi_reduction <add>, %41, %cst_15 [1] : vector<32x64xf32> to vector<32xf32>
    %43 = vector.shape_cast %42 : vector<32xf32> to vector<32x1xf32>
    %cst_16 = arith.constant 6.400000e+01 : f32
    %44 = vector.broadcast %cst_16 : f32 to vector<32x1xf32>
    %45 = arith.divf %43, %44 : vector<32x1xf32>
    %46 = vector.broadcast %45 : vector<32x1xf32> to vector<32x64xf32>
    %47 = arith.subf %41, %46 : vector<32x64xf32>
    %48 = arith.mulf %47, %47 : vector<32x64xf32>
    %cst_17 = arith.constant dense<0.000000e+00> : vector<32xf32>
    %49 = vector.multi_reduction <add>, %48, %cst_17 [1] : vector<32x64xf32> to vector<32xf32>
    %50 = vector.shape_cast %49 : vector<32xf32> to vector<32x1xf32>
    %cst_18 = arith.constant 6.400000e+01 : f32
    %51 = vector.broadcast %cst_18 : f32 to vector<32x1xf32>
    %52 = arith.divf %50, %51 : vector<32x1xf32>
    %53 = vector.broadcast %45 : vector<32x1xf32> to vector<32x64xf32>
    %54 = arith.subf %41, %53 : vector<32x64xf32>
    %cst_19 = arith.constant 9.99999974E-6 : f32
    %55 = vector.broadcast %cst_19 : f32 to vector<32x1xf32>
    %56 = arith.addf %52, %55 : vector<32x1xf32>
    %57 = math.rsqrt %56 : vector<32x1xf32>
    %58 = vector.broadcast %57 : vector<32x1xf32> to vector<32x64xf32>
    %59 = arith.mulf %54, %58 : vector<32x64xf32>
    %cst_20 = arith.constant 0.000000e+00 : f32
    %60 = vector.broadcast %cst_20 : f32 to vector<32x64xf32>
    %61 = arith.maximumf %59, %60 : vector<32x64xf32>
    %62 = tpu.concatenate %40, %61 in 1 : vector<32x64xf32>, vector<32x64xf32> -> vector<32x128xf32>
    %63 = arith.truncf %62 : vector<32x128xf32> to vector<32x128xbf16>
    %c0_21 = arith.constant 0 : index
    %c0_22 = arith.constant 0 : index
    %64 = vector.load %arg6[%c0_21, %c0_22] : memref<128x8xbf16, #tpu.memory_space<vmem>>, vector<128x8xbf16>
    %cst_23 = arith.constant dense<0.000000e+00> : vector<32x8xf32>
    %65 = tpu.matmul %63, %64, %cst_23 {dimension_numbers = #tpu.dot_dimension_numbers<[1], [0], [0], [1], [0, 0, 1, 1], [], []>} : vector<32x128xbf16>, vector<128x8xbf16>, vector<32x8xf32> -> vector<32x8xf32>
    %c0_24 = arith.constant 0 : index
    %c0_25 = arith.constant 0 : index
    %66 = vector.load %arg7[%c0_24, %c0_25] : memref<1x8xf32, #tpu.memory_space<vmem>>, vector<1x8xf32>
    %67 = vector.broadcast %66 : vector<1x8xf32> to vector<32x8xf32>
    %68 = arith.addf %65, %67 : vector<32x8xf32>
    %69 = vector.shape_cast %68 : vector<32x8xf32> to vector<2x16x8xf32>
    %70 = tpu.transpose %69, [0, 2, 1] : vector<2x16x8xf32> -> vector<2x8x16xf32>
    %71 = vector.extract_strided_slice %70 {offsets = [0, 0, 0], sizes = [2, 1, 16], strides = [1, 1, 1]} : vector<2x8x16xf32> to vector<2x1x16xf32>
    %cst_26 = arith.constant dense<0xFF800000> : vector<2x1xf32>
    %72 = vector.multi_reduction <maximumf>, %71, %cst_26 [2] : vector<2x1x16xf32> to vector<2x1xf32>
    %73 = vector.shape_cast %72 : vector<2x1xf32> to vector<2x1x1xf32>
    %74 = vector.broadcast %73 : vector<2x1x1xf32> to vector<2x1x16xf32>
    %75 = arith.subf %71, %74 : vector<2x1x16xf32>
    %76 = math.exp %75 : vector<2x1x16xf32>
    %cst_27 = arith.constant dense<0.000000e+00> : vector<2x1xf32>
    %77 = vector.multi_reduction <add>, %76, %cst_27 [2] : vector<2x1x16xf32> to vector<2x1xf32>
    %78 = vector.shape_cast %77 : vector<2x1xf32> to vector<2x1x1xf32>
    %79 = math.log %78 : vector<2x1x1xf32>
    %80 = vector.broadcast %79 : vector<2x1x1xf32> to vector<2x1x16xf32>
    %81 = arith.subf %75, %80 : vector<2x1x16xf32>
    %c0_28 = arith.constant 0 : index
    %c0_29 = arith.constant 0 : index
    %c0_30 = arith.constant 0 : index
    %82 = vector.load %arg8[%c0_28, %c0_29, %c0_30] : memref<2x1x16xf32, #tpu.memory_space<vmem>>, vector<2x1x16xf32>
    tpu.vector_store %arg8[%c0_28, %c0_29, %c0_30], %81 {strides = array<i32>} : memref<2x1x16xf32, #tpu.memory_space<vmem>>, vector<2x1x16xf32>,
    %83 = vector.extract_strided_slice %70 {offsets = [0, 1, 0], sizes = [2, 2, 16], strides = [1, 1, 1]} : vector<2x8x16xf32> to vector<2x2x16xf32>
    %c0_31 = arith.constant 0 : index
    %c0_32 = arith.constant 0 : index
    %c0_33 = arith.constant 0 : index
    %84 = vector.load %arg9[%c0_31, %c0_32, %c0_33] : memref<2x2x16xf32, #tpu.memory_space<vmem>>, vector<2x2x16xf32>
    tpu.vector_store %arg9[%c0_31, %c0_32, %c0_33], %83 {strides = array<i32>} : memref<2x2x16xf32, #tpu.memory_space<vmem>>, vector<2x2x16xf32>,
    return
  }
  func.func @transform_0(%arg0: i32) -> (i32, i32) {
    %c0_i32 = arith.constant 0 : i32
    %c0_i32_0 = arith.constant 0 : i32
    return %arg0, %c0_i32 : i32, i32
  }
  func.func @transform_1(%arg0: i32) -> (i32, i32) {
    %c0_i32 = arith.constant 0 : i32
    %c0_i32_0 = arith.constant 0 : i32
    return %arg0, %c0_i32 : i32, i32
  }
  func.func @transform_2(%arg0: i32) -> (i32, i32) {
    %c0_i32 = arith.constant 0 : i32
    %c0_i32_0 = arith.constant 0 : i32
    %c0_i32_1 = arith.constant 0 : i32
    return %c0_i32, %c0_i32_0 : i32, i32
  }
  func.func @transform_3(%arg0: i32) -> (i32, i32) {
    %c0_i32 = arith.constant 0 : i32
    %c0_i32_0 = arith.constant 0 : i32
    %c0_i32_1 = arith.constant 0 : i32
    return %c0_i32, %c0_i32_0 : i32, i32
  }
  func.func @transform_4(%arg0: i32) -> (i32, i32) {
    %c0_i32 = arith.constant 0 : i32
    %c0_i32_0 = arith.constant 0 : i32
    %c0_i32_1 = arith.constant 0 : i32
    return %c0_i32, %c0_i32_0 : i32, i32
  }
  func.func @transform_5(%arg0: i32) -> (i32, i32) {
    %c0_i32 = arith.constant 0 : i32
    %c0_i32_0 = arith.constant 0 : i32
    %c0_i32_1 = arith.constant 0 : i32
    return %c0_i32, %c0_i32_0 : i32, i32
  }
  func.func @transform_6(%arg0: i32) -> (i32, i32) {
    %c0_i32 = arith.constant 0 : i32
    %c0_i32_0 = arith.constant 0 : i32
    %c0_i32_1 = arith.constant 0 : i32
    return %c0_i32, %c0_i32_0 : i32, i32
  }
  func.func @transform_7(%arg0: i32) -> (i32, i32, i32) {
    %c0_i32 = arith.constant 0 : i32
    %c0_i32_0 = arith.constant 0 : i32
    %c0_i32_1 = arith.constant 0 : i32
    return %arg0, %c0_i32, %c0_i32_0 : i32, i32, i32
  }
  func.func @transform_8(%arg0: i32) -> (i32, i32, i32) {
    %c0_i32 = arith.constant 0 : i32
    %c0_i32_0 = arith.constant 0 : i32
    %c0_i32_1 = arith.constant 0 : i32
    return %arg0, %c0_i32, %c0_i32_0 : i32, i32, i32
  }
}

</mosaic_0001>

<llo_original>
// kernel: tpu_custom_call.1
$region0: #{tpu_custom_call.1}
  #allocation0 [shape = 'u32[]', space=smem, size = 0x4, offset = 0x4, fixed_abs, tag = 'smem constant byte address 0x4 - core index']
  #allocation1 [shape = 'u32[72,128]{1,0:T(1,128)}', space=vmem, size = 0x9000, scoped, tag = 'internal scratch']
  %s0 = inlined_call_operand.vmem [shape: f32[32,2], index: 0, kind: input, shape index: {}]
  %s1 = inlined_call_operand.vmem [shape: bf16[32,64], index: 1, kind: input, shape index: {}]
  %s2 = inlined_call_operand.vmem [shape: bf16[64,128], index: 2, kind: input, shape index: {}]
  %s3 = inlined_call_operand.vmem [shape: f32[2,128], index: 3, kind: input, shape index: {}]
  %s4 = inlined_call_operand.vmem [shape: f32[1,128], index: 4, kind: input, shape index: {}]
  %s5 = inlined_call_operand.vmem [shape: bf16[128,8], index: 5, kind: input, shape index: {}]
  %s6 = inlined_call_operand.vmem [shape: f32[1,8], index: 6, kind: input, shape index: {}]
  %s7 = inlined_call_operand.hbm [shape: f32[2,1,16], index: 7, kind: output, shape index: {0}]
  %s8 = inlined_call_operand.hbm [shape: f32[2,2,16], index: 8, kind: output, shape index: {1}]
  %9 = xla_tuple %s7, %s8
  %s10 = sld [smem:[#allocation0]]
  $region46: #{tpu_custom_call.1} parent=0
    _
  %s12 = ssub.s32 1, %s10
  %s13 = scalar_select 0, %s12, %s10
  $region1: #{tpu_custom_call.1} parent=0
    #allocation2 [shape = 'u8[1024]{0}', space=vmem, size = 0x400, scoped, tag = 'output window, operand 0, single buffered']
    #allocation3 [shape = 's32[1]{0}', space=sflag, size = 0x4, scoped, tag = 'scoped memory for tpu_custom_call.1']
    #allocation4 [shape = 'u8[2048]{0}', space=vmem, size = 0x800, scoped, tag = 'output window, operand 1, single buffered']
    #allocation5 [shape = 's32[1]{0}', space=sflag, size = 0x4, scoped, tag = 'scoped memory for tpu_custom_call.1']
    %14 = vsyncpa [#allocation3], 0
    %15 = vsyncpa [#allocation5], 0
    // Predicated region
    $region2: #{tpu_custom_call.1} parent=1 // pred_check
      _
    $region3: #{tpu_custom_call.1} parent=1 // pred_check_branch
      %17 = sbr.rel (0) target = $region5
    $region4: #{tpu_custom_call.1} parent=1 // pred_region
      _
    $region5: #{tpu_custom_call.1} parent=1 // pred_fallthru
      _
    // Predicated region
    $region6: #{tpu_custom_call.1} parent=1 // pred_check
      _
    $region7: #{tpu_custom_call.1} parent=1 // pred_check_branch
      %19 = sbr.rel (0) target = $region9
    $region8: #{tpu_custom_call.1} parent=1 // pred_region
      _
    $region9: #{tpu_custom_call.1} parent=1 // pred_fallthru
      _
    // Predicated region
    $region10: #{tpu_custom_call.1} parent=1 // pred_check
      _
    $region11: #{tpu_custom_call.1} parent=1 // pred_check_branch
      %21 = sbr.rel (0) target = $region13
    $region12: #{tpu_custom_call.1} parent=1 // pred_region
      _
    $region13: #{tpu_custom_call.1} parent=1 // pred_fallthru
      _
    // Predicated region
    $region14: #{tpu_custom_call.1} parent=1 // pred_check
      _
    $region15: #{tpu_custom_call.1} parent=1 // pred_check_branch
      %23 = sbr.rel (0) target = $region17
    $region16: #{tpu_custom_call.1} parent=1 // pred_region
      _
    $region17: #{tpu_custom_call.1} parent=1 // pred_fallthru
      _
    // Predicated region
    $region18: #{tpu_custom_call.1} parent=1 // pred_check
      _
    $region19: #{tpu_custom_call.1} parent=1 // pred_check_branch
      %25 = sbr.rel (0) target = $region21
    $region20: #{tpu_custom_call.1} parent=1 // pred_region
      _
    $region21: #{tpu_custom_call.1} parent=1 // pred_fallthru
      _
    // Predicated region
    $region22: #{tpu_custom_call.1} parent=1 // pred_check
      _
    $region23: #{tpu_custom_call.1} parent=1 // pred_check_branch
      %27 = sbr.rel (0) target = $region25
    $region24: #{tpu_custom_call.1} parent=1 // pred_region
      _
    $region25: #{tpu_custom_call.1} parent=1 // pred_fallthru
      _
    // Predicated region
    $region26: #{tpu_custom_call.1} parent=1 // pred_check
      _
    $region27: #{tpu_custom_call.1} parent=1 // pred_check_branch
      %29 = sbr.rel (0) target = $region29
    $region28: #{tpu_custom_call.1} parent=1 // pred_region
      _
    $region29: #{tpu_custom_call.1} parent=1 // pred_fallthru
      _
    %v31 = vld [vmem:[%s1] sm:$0xf]
    %v32 = vld [vmem:[%s1 + $0x4] sm:$0xf]
    %v33 = vld [vmem:[%s1 + $0x8] sm:$0xf]
    %v34 = vld [vmem:[%s1 + $0xc] sm:$0xf]
    %v35 = vld [vmem:[%s2] sm:$0xf]
    %v36 = vld [vmem:[%s2 + $0x4] sm:$0xf]
    %v37 = vld [vmem:[%s2 + $0x8] sm:$0xf]
    %v38 = vld [vmem:[%s2 + $0xc] sm:$0xf]
    %v39 = vld [vmem:[%s2 + $0x10] sm:$0xf]
    %v40 = vld [vmem:[%s2 + $0x14] sm:$0xf]
    %v41 = vld [vmem:[%s2 + $0x18] sm:$0xf]
    %v42 = vld [vmem:[%s2 + $0x1c] sm:$0xf]
    %v43 = vld [vmem:[%s0] sm:$0xff]
    %v44 = vld [vmem:[%s0 + $0x8] sm:$0xff]
    %v45 = vld [vmem:[%s0 + $0x10] sm:$0xff]
    %v46 = vld [vmem:[%s0 + $0x18] sm:$0xff]
    %v47 = vld [vmem:[%s3] sm:$0x3]
    %49 = vset.pattern.permute.xlu0 0
    %50 = vperm.xlu0 %49, %v43
    %v51 = vpop.permute.xlu0 %50
    %54 = vset.pattern.permute.xlu0 0
    %55 = vperm.xlu0 %54, %v44
    %v56 = vpop.permute.xlu0 %55
    %59 = vset.pattern.permute.xlu0 0
    %60 = vperm.xlu0 %59, %v45
    %v61 = vpop.permute.xlu0 %60
    %64 = vset.pattern.permute.xlu0 0
    %65 = vperm.xlu0 %64, %v46
    %v66 = vpop.permute.xlu0 %65
    %v68 = vperm.slane %v47, 0
    %v69 = vmul.f32 %v51, %v68
    %v70 = vmul.f32 %v56, %v68
    %v71 = vmul.f32 %v61, %v68
    %v72 = vmul.f32 %v66, %v68
    %v77 = vunpack.c.l.b16 %v31
    %v78 = vunpack.c.l.b16 %v32
    %v79 = vunpack.c.l.b16 %v33
    %v80 = vunpack.c.l.b16 %v34
    %v81 = vpack.c.b16 %v78, %v77
    %v82 = vpack.c.b16 %v80, %v79
    %v91 = vunpack.c.l.b16 %v35
    %v92 = vunpack.c.l.b16 %v36
    %v93 = vunpack.c.l.b16 %v37
    %v94 = vunpack.c.l.b16 %v38
    %v95 = vunpack.c.l.b16 %v39
    %v96 = vunpack.c.l.b16 %v40
    %v97 = vunpack.c.l.b16 %v41
    %v98 = vunpack.c.l.b16 %v42
    %v99 = vpack.c.b16 %v92, %v91
    %v100 = vpack.c.b16 %v94, %v93
    %v101 = vpack.c.b16 %v96, %v95
    %v102 = vpack.c.b16 %v98, %v97
    %vm107 = vcmask 523264
    %v109 = vsel %vm107, %v81, 0
    %v112 = vsel %vm107, %v82, 0
    %114 = vmatpush.bf16.msra.mxu0 0
    %115 = vmatpush.bf16.msra.mxu0 0
    %116 = vmatpush.bf16.msra.mxu0 0
    %117 = vmatpush.bf16.msra.mxu0 0
    %118 = vmatpush.bf16.msra.mxu0 %v102
    %119 = vmatpush.bf16.msra.mxu0 %v101
    %120 = vmatpush.bf16.msra.mxu0 %v100
    %121 = vmatpush.bf16.msra.mxu0 %v99
    %122 = vmatmul.bf16.gmra.mxu0 %v109
    %v123 = vpop.f32.mrf.mxu0
    %v124 = vadd.f32 %v69, %v123
    %v125 = vpop.f32.mrf.mxu0
    %v126 = vadd.f32 %v70, %v125
    %127 = vmatmul.bf16.gmra.mxu0 %v112
    %v128 = vpop.f32.mrf.mxu0
    %v129 = vadd.f32 %v71, %v128
    %v130 = vpop.f32.mrf.mxu0
    %v131 = vadd.f32 %v72, %v130
    %132 = vdwg.mxu0
    %133 = vset.pattern.permute.xlu0 1
    %134 = vperm.xlu0 %133, %v43
    %v135 = vpop.permute.xlu0 %134
    %137 = vset.pattern.permute.xlu0 1
    %138 = vperm.xlu0 %137, %v44
    %v139 = vpop.permute.xlu0 %138
    %141 = vset.pattern.permute.xlu0 1
    %142 = vperm.xlu0 %141, %v45
    %v143 = vpop.permute.xlu0 %142
    %145 = vset.pattern.permute.xlu0 1
    %146 = vperm.xlu0 %145, %v46
    %v147 = vpop.permute.xlu0 %146
    %v149 = vperm.slane %v47, 1
    %v150 = vmul.f32 %v135, %v149
    %v151 = vmul.f32 %v139, %v149
    %v152 = vmul.f32 %v143, %v149
    %v153 = vmul.f32 %v147, %v149
    %v154 = vadd.f32 %v124, %v150
    %v155 = vadd.f32 %v126, %v151
    %v156 = vadd.f32 %v129, %v152
    %v157 = vadd.f32 %v131, %v153
    %v158 = vld [vmem:[%s4] sm:$0x1]
    %v160 = vperm.slane %v158, 0
    %v162 = vadd.f32 %v154, %v160
    %v163 = vadd.f32 %v155, %v160
    %v164 = vadd.f32 %v156, %v160
    %v165 = vadd.f32 %v157, %v160
    %v166 = vsel %vm107, %v162, 0.0
    %167 = vadd.xlane.f32.xlu0 %v166
    %v168 = vpop.xlane.xlu0 %167
    %v169 = vsel %vm107, %v163, 0.0
    %170 = vadd.xlane.f32.xlu0 %v169
    %v171 = vpop.xlane.xlu0 %170
    %v172 = vsel %vm107, %v164, 0.0
    %173 = vadd.xlane.f32.xlu0 %v172
    %v174 = vpop.xlane.xlu0 %173
    %v175 = vsel %vm107, %v165, 0.0
    %176 = vadd.xlane.f32.xlu0 %v175
    %v177 = vpop.xlane.xlu0 %176
    %v178 = vrcp.pop 64.0
    %v179 = vmul.f32 64.0, %v178
    %v180 = vsub.f32 1.0, %v179
    %v181 = vmul.f32 %v178, %v180
    %v182 = vadd.f32 %v178, %v181
    %vm183 = vweird.f32 %v178
    %v184 = vsel %vm183, %v178, %v182
    %v185 = vmul.f32 %v168, %v184
    %v186 = vmul.f32 %v171, %v184
    %v187 = vmul.f32 %v174, %v184
    %v188 = vmul.f32 %v177, %v184
    %v189 = vsub.f32 %v162, %v185
    %v190 = vsub.f32 %v163, %v186
    %v191 = vsub.f32 %v164, %v187
    %v192 = vsub.f32 %v165, %v188
    %v193 = vmul.f32 %v189, %v189
    %v194 = vmul.f32 %v190, %v190
    %v195 = vmul.f32 %v191, %v191
    %v196 = vmul.f32 %v192, %v192
    %v197 = vsel %vm107, %v193, 0.0
    %198 = vadd.xlane.f32.xlu0 %v197
    %v199 = vpop.xlane.xlu0 %198
    %v200 = vsel %vm107, %v194, 0.0
    %201 = vadd.xlane.f32.xlu0 %v200
    %v202 = vpop.xlane.xlu0 %201
    %v203 = vsel %vm107, %v195, 0.0
    %204 = vadd.xlane.f32.xlu0 %v203
    %v205 = vpop.xlane.xlu0 %204
    %v206 = vsel %vm107, %v196, 0.0
    %207 = vadd.xlane.f32.xlu0 %v206
    %v208 = vpop.xlane.xlu0 %207
    %v209 = vmul.f32 %v199, %v184
    %v210 = vmul.f32 %v202, %v184
    %v211 = vmul.f32 %v205, %v184
    %v212 = vmul.f32 %v208, %v184
    %v213 = vadd.f32 %v209, 1e-05
    %v214 = vadd.f32 %v210, 1e-05
    %v215 = vadd.f32 %v211, 1e-05
    %v216 = vadd.f32 %v212, 1e-05
    %v217 = vrsqrt.pop %v213
    %v218 = vmul.f32 %v217, %v213
    %v219 = vmul.f32 %v218, %v217
    %v220 = vmul.f32 0.5, %v219
    %v221 = vsub.f32 1.5, %v220
    %v222 = vmul.f32 %v217, %v221
    %vm223 = vweird.f32 %v213
    %vm224 = vweird.f32 %v217
    %vm225 = vmor %vm223, %vm224
    %v226 = vsel %vm225, %v217, %v222
    %v227 = vrsqrt.pop %v214
    %v228 = vmul.f32 %v227, %v214
    %v229 = vmul.f32 %v228, %v227
    %v230 = vmul.f32 0.5, %v229
    %v231 = vsub.f32 1.5, %v230
    %v232 = vmul.f32 %v227, %v231
    %vm233 = vweird.f32 %v214
    %vm234 = vweird.f32 %v227
    %vm235 = vmor %vm233, %vm234
    %v236 = vsel %vm235, %v227, %v232
    %v237 = vrsqrt.pop %v215
    %v238 = vmul.f32 %v237, %v215
    %v239 = vmul.f32 %v238, %v237
    %v240 = vmul.f32 0.5, %v239
    %v241 = vsub.f32 1.5, %v240
    %v242 = vmul.f32 %v237, %v241
    %vm243 = vweird.f32 %v215
    %vm244 = vweird.f32 %v237
    %vm245 = vmor %vm243, %vm244
    %v246 = vsel %vm245, %v237, %v242
    %v247 = vrsqrt.pop %v216
    %v248 = vmul.f32 %v247, %v216
    %v249 = vmul.f32 %v248, %v247
    %v250 = vmul.f32 0.5, %v249
    %v251 = vsub.f32 1.5, %v250
    %v252 = vmul.f32 %v247, %v251
    %vm253 = vweird.f32 %v216
    %vm254 = vweird.f32 %v247
    %vm255 = vmor %vm253, %vm254
    %v256 = vsel %vm255, %v247, %v252
    %v257 = vmul.f32 %v189, %v226
    %v258 = vmul.f32 %v190, %v236
    %v259 = vmul.f32 %v191, %v246
    %v260 = vmul.f32 %v192, %v256
    %v261 = vmax.f32 %v257, 0.0
    %v262 = vmax.f32 %v258, 0.0
    %v263 = vmax.f32 %v259, 0.0
    %v264 = vmax.f32 %v260, 0.0
    %269 = vrot.lane.b32.xlu0 %v162, 64
    %v270 = vpop.permute.xlu0 %269
    %271 = vrot.lane.b32.xlu0 %v163, 64
    %v272 = vpop.permute.xlu0 %271
    %273 = vrot.lane.b32.xlu0 %v164, 64
    %v274 = vpop.permute.xlu0 %273
    %275 = vrot.lane.b32.xlu0 %v165, 64
    %v276 = vpop.permute.xlu0 %275
    %v281 = vsel %vm107, %v270, 0.0
    %282 = vadd.xlane.f32.xlu0 %v281
    %v283 = vpop.xlane.xlu0 %282
    %v284 = vsel %vm107, %v272, 0.0
    %285 = vadd.xlane.f32.xlu0 %v284
    %v286 = vpop.xlane.xlu0 %285
    %v287 = vsel %vm107, %v274, 0.0
    %288 = vadd.xlane.f32.xlu0 %v287
    %v289 = vpop.xlane.xlu0 %288
    %v290 = vsel %vm107, %v276, 0.0
    %291 = vadd.xlane.f32.xlu0 %v290
    %v292 = vpop.xlane.xlu0 %291
    %v293 = vmul.f32 %v283, %v184
    %v294 = vmul.f32 %v286, %v184
    %v295 = vmul.f32 %v289, %v184
    %v296 = vmul.f32 %v292, %v184
    %v297 = vsub.f32 %v162, %v293
    %v298 = vsub.f32 %v163, %v294
    %v299 = vsub.f32 %v164, %v295
    %v300 = vsub.f32 %v165, %v296
    %v301 = vmul.f32 %v297, %v297
    %v302 = vmul.f32 %v298, %v298
    %v303 = vmul.f32 %v299, %v299
    %v304 = vmul.f32 %v300, %v300
    %309 = vrot.lane.b32.xlu0 %v301, 64
    %v310 = vpop.permute.xlu0 %309
    %311 = vrot.lane.b32.xlu0 %v302, 64
    %v312 = vpop.permute.xlu0 %311
    %313 = vrot.lane.b32.xlu0 %v303, 64
    %v314 = vpop.permute.xlu0 %313
    %315 = vrot.lane.b32.xlu0 %v304, 64
    %v316 = vpop.permute.xlu0 %315
    %v321 = vsel %vm107, %v310, 0.0
    %322 = vadd.xlane.f32.xlu0 %v321
    %v323 = vpop.xlane.xlu0 %322
    %v324 = vsel %vm107, %v312, 0.0
    %325 = vadd.xlane.f32.xlu0 %v324
    %v326 = vpop.xlane.xlu0 %325
    %v327 = vsel %vm107, %v314, 0.0
    %328 = vadd.xlane.f32.xlu0 %v327
    %v329 = vpop.xlane.xlu0 %328
    %v330 = vsel %vm107, %v316, 0.0
    %331 = vadd.xlane.f32.xlu0 %v330
    %v332 = vpop.xlane.xlu0 %331
    %v333 = vmul.f32 %v323, %v184
    %v334 = vmul.f32 %v326, %v184
    %v335 = vmul.f32 %v329, %v184
    %v336 = vmul.f32 %v332, %v184
    %v337 = vadd.f32 %v333, 1e-05
    %v338 = vadd.f32 %v334, 1e-05
    %v339 = vadd.f32 %v335, 1e-05
    %v340 = vadd.f32 %v336, 1e-05
    %v341 = vrsqrt.pop %v337
    %v342 = vmul.f32 %v341, %v337
    %v343 = vmul.f32 %v342, %v341
    %v344 = vmul.f32 0.5, %v343
    %v345 = vsub.f32 1.5, %v344
    %v346 = vmul.f32 %v341, %v345
    %vm347 = vweird.f32 %v337
    %vm348 = vweird.f32 %v341
    %vm349 = vmor %vm347, %vm348
    %v350 = vsel %vm349, %v341, %v346
    %v351 = vrsqrt.pop %v338
    %v352 = vmul.f32 %v351, %v338
    %v353 = vmul.f32 %v352, %v351
    %v354 = vmul.f32 0.5, %v353
    %v355 = vsub.f32 1.5, %v354
    %v356 = vmul.f32 %v351, %v355
    %vm357 = vweird.f32 %v338
    %vm358 = vweird.f32 %v351
    %vm359 = vmor %vm357, %vm358
    %v360 = vsel %vm359, %v351, %v356
    %v361 = vrsqrt.pop %v339
    %v362 = vmul.f32 %v361, %v339
    %v363 = vmul.f32 %v362, %v361
    %v364 = vmul.f32 0.5, %v363
    %v365 = vsub.f32 1.5, %v364
    %v366 = vmul.f32 %v361, %v365
    %vm367 = vweird.f32 %v339
    %vm368 = vweird.f32 %v361
    %vm369 = vmor %vm367, %vm368
    %v370 = vsel %vm369, %v361, %v366
    %v371 = vrsqrt.pop %v340
    %v372 = vmul.f32 %v371, %v340
    %v373 = vmul.f32 %v372, %v371
    %v374 = vmul.f32 0.5, %v373
    %v375 = vsub.f32 1.5, %v374
    %v376 = vmul.f32 %v371, %v375
    %vm377 = vweird.f32 %v340
    %vm378 = vweird.f32 %v371
    %vm379 = vmor %vm377, %vm378
    %v380 = vsel %vm379, %v371, %v376
    %v381 = vmul.f32 %v297, %v350
    %v382 = vmul.f32 %v298, %v360
    %v383 = vmul.f32 %v299, %v370
    %v384 = vmul.f32 %v300, %v380
    %v385 = vmax.f32 %v381, 0.0
    %v386 = vmax.f32 %v382, 0.0
    %v387 = vmax.f32 %v383, 0.0
    %v388 = vmax.f32 %v384, 0.0
    %v389 = vsel %vm107, %v261, %v385
    %v390 = vsel %vm107, %v262, %v386
    %v391 = vsel %vm107, %v263, %v387
    %v392 = vsel %vm107, %v264, %v388
    %v393 = vpack.c.bf16 %v390, %v389
    %v394 = vpack.c.bf16 %v392, %v391
    %v395 = vld [vmem:[%s5] sm:$0xf]
    %v396 = vld [vmem:[%s5 + $0x4] sm:$0xf]
    %v397 = vld [vmem:[%s5 + $0x8] sm:$0xf]
    %v398 = vld [vmem:[%s5 + $0xc] sm:$0xf]
    %v399 = vld [vmem:[%s5 + $0x10] sm:$0xf]
    %v400 = vld [vmem:[%s5 + $0x14] sm:$0xf]
    %v401 = vld [vmem:[%s5 + $0x18] sm:$0xf]
    %v402 = vld [vmem:[%s5 + $0x1c] sm:$0xf]
    %v403 = vld [vmem:[%s5 + $0x20] sm:$0xf]
    %v404 = vld [vmem:[%s5 + $0x24] sm:$0xf]
    %v405 = vld [vmem:[%s5 + $0x28] sm:$0xf]
    %v406 = vld [vmem:[%s5 + $0x2c] sm:$0xf]
    %v407 = vld [vmem:[%s5 + $0x30] sm:$0xf]
    %v408 = vld [vmem:[%s5 + $0x34] sm:$0xf]
    %v409 = vld [vmem:[%s5 + $0x38] sm:$0xf]
    %v410 = vld [vmem:[%s5 + $0x3c] sm:$0xf]
    %v411 = vld [vmem:[%s6] sm:$0x1]
    %v413 = vperm.slane %v411, 0
    %v431 = vunpack.c.l.b16 %v395
    %v432 = vunpack.c.l.b16 %v396
    %v433 = vunpack.c.l.b16 %v397
    %v434 = vunpack.c.l.b16 %v398
    %v435 = vunpack.c.l.b16 %v399
    %v436 = vunpack.c.l.b16 %v400
    %v437 = vunpack.c.l.b16 %v401
    %v438 = vunpack.c.l.b16 %v402
    %v439 = vunpack.c.l.b16 %v403
    %v440 = vunpack.c.l.b16 %v404
    %v441 = vunpack.c.l.b16 %v405
    %v442 = vunpack.c.l.b16 %v406
    %v443 = vunpack.c.l.b16 %v407
    %v444 = vunpack.c.l.b16 %v408
    %v445 = vunpack.c.l.b16 %v409
    %v446 = vunpack.c.l.b16 %v410
    %v447 = vpack.c.b16 %v432, %v431
    %v448 = vpack.c.b16 %v434, %v433
    %v449 = vpack.c.b16 %v436, %v435
    %v450 = vpack.c.b16 %v438, %v437
    %v451 = vpack.c.b16 %v440, %v439
    %v452 = vpack.c.b16 %v442, %v441
    %v453 = vpack.c.b16 %v444, %v443
    %v454 = vpack.c.b16 %v446, %v445
    %463 = vmatpush.bf16.msra.mxu0 %v454
    %464 = vmatpush.bf16.msra.mxu0 %v453
    %465 = vmatpush.bf16.msra.mxu0 %v452
    %466 = vmatpush.bf16.msra.mxu0 %v451
    %467 = vmatpush.bf16.msra.mxu0 %v450
    %468 = vmatpush.bf16.msra.mxu0 %v449
    %469 = vmatpush.bf16.msra.mxu0 %v448
    %470 = vmatpush.bf16.msra.mxu0 %v447
    %471 = vmatmul.bf16.gmra.mxu0 %v393
    %v472 = vpop.f32.mrf.mxu0
    %v473 = vadd.f32 %v413, %v472
    %v474 = vpop.f32.mrf.mxu0
    %v475 = vadd.f32 %v413, %v474
    %476 = vmatmul.bf16.gmra.mxu0 %v394
    %v477 = vpop.f32.mrf.mxu0
    %v478 = vadd.f32 %v413, %v477
    %v479 = vpop.f32.mrf.mxu0
    %v480 = vadd.f32 %v413, %v479
    %481 = vdwg.mxu0
    %482 = vxpose.xlu0.b32.start [1/16] %v473, 128
    %483 = vxpose.xlu0.b32.cont [2/16] %v475, 128
    %484 = vxpose.xlu0.b32.cont [3/16] 0.0, 128
    %485 = vxpose.xlu0.b32.cont [4/16] 0.0, 128
    %486 = vxpose.xlu0.b32.cont [5/16] 0.0, 128
    %487 = vxpose.xlu0.b32.cont [6/16] 0.0, 128
    %488 = vxpose.xlu0.b32.cont [7/16] 0.0, 128
    %489 = vxpose.xlu0.b32.cont [8/16] 0.0, 128
    %490 = vxpose.xlu0.b32.cont [9/16] 0.0, 128
    %491 = vxpose.xlu0.b32.cont [10/16] 0.0, 128
    %492 = vxpose.xlu0.b32.cont [11/16] 0.0, 128
    %493 = vxpose.xlu0.b32.cont [12/16] 0.0, 128
    %494 = vxpose.xlu0.b32.cont [13/16] 0.0, 128
    %495 = vxpose.xlu0.b32.cont [14/16] 0.0, 128
    %496 = vxpose.xlu0.b32.cont [15/16] 0.0, 128
    %497 = vxpose.xlu0.b32.end [16/16] 0.0, 128
    %v498 = vpop.trf.xlu0
    %v499 = vpop.trf.xlu0
    %v500 = vpop.trf.xlu0
    %v501 = vpop.trf.xlu0
    %v502 = vpop.trf.xlu0
    %v503 = vpop.trf.xlu0
    %v504 = vpop.trf.xlu0
    %v505 = vpop.trf.xlu0
    %v506 = vpop.trf.xlu0
    %v507 = vpop.trf.xlu0
    %v508 = vpop.trf.xlu0
    %v509 = vpop.trf.xlu0
    %v510 = vpop.trf.xlu0
    %v511 = vpop.trf.xlu0
    %v512 = vpop.trf.xlu0
    %v513 = vpop.trf.xlu0
    %514 = vxpose.xlu0.b32.start [1/16] %v478, 128
    %515 = vxpose.xlu0.b32.cont [2/16] %v480, 128
    %516 = vxpose.xlu0.b32.cont [3/16] 0.0, 128
    %517 = vxpose.xlu0.b32.cont [4/16] 0.0, 128
    %518 = vxpose.xlu0.b32.cont [5/16] 0.0, 128
    %519 = vxpose.xlu0.b32.cont [6/16] 0.0, 128
    %520 = vxpose.xlu0.b32.cont [7/16] 0.0, 128
    %521 = vxpose.xlu0.b32.cont [8/16] 0.0, 128
    %522 = vxpose.xlu0.b32.cont [9/16] 0.0, 128
    %523 = vxpose.xlu0.b32.cont [10/16] 0.0, 128
    %524 = vxpose.xlu0.b32.cont [11/16] 0.0, 128
    %525 = vxpose.xlu0.b32.cont [12/16] 0.0, 128
    %526 = vxpose.xlu0.b32.cont [13/16] 0.0, 128
    %527 = vxpose.xlu0.b32.cont [14/16] 0.0, 128
    %528 = vxpose.xlu0.b32.cont [15/16] 0.0, 128
    %529 = vxpose.xlu0.b32.end [16/16] 0.0, 128
    %v530 = vpop.trf.xlu0
    %v531 = vpop.trf.xlu0
    %v532 = vpop.trf.xlu0
    %v533 = vpop.trf.xlu0
    %v534 = vpop.trf.xlu0
    %v535 = vpop.trf.xlu0
    %v536 = vpop.trf.xlu0
    %v537 = vpop.trf.xlu0
    %v538 = vpop.trf.xlu0
    %v539 = vpop.trf.xlu0
    %v540 = vpop.trf.xlu0
    %v541 = vpop.trf.xlu0
    %v542 = vpop.trf.xlu0
    %v543 = vpop.trf.xlu0
    %v544 = vpop.trf.xlu0
    %v545 = vpop.trf.xlu0
    %vm546 = vcmask 122880
    %v547 = vsel %vm546, %v498, -inf
    %548 = vmax.xlane.f32.xlu0 %v547
    %v549 = vpop.xlane.xlu0 %548
    %v550 = vsel %vm546, %v530, -inf
    %551 = vmax.xlane.f32.xlu0 %v550
    %v552 = vpop.xlane.xlu0 %551
    %v553 = vsub.f32 %v498, %v549
    %v554 = vsub.f32 %v530, %v552
    %v555 = vmul.f32 %v553, 1.442695
    %v556 = vpow.pop %v555
    %v557 = vmul.f32 %v554, 1.442695
    %v558 = vpow.pop %v557
    %v559 = vsel %vm546, %v556, 0.0
    %560 = vadd.xlane.f32.xlu0 %v559
    %v561 = vpop.xlane.xlu0 %560
    %v562 = vsel %vm546, %v558, 0.0
    %563 = vadd.xlane.f32.xlu0 %v562
    %v564 = vpop.xlane.xlu0 %563
    %v565 = vlog2.pop %v561
    %v566 = vmul.f32 %v565, 0.6931472
    %v567 = vlog2.pop %v564
    %v568 = vmul.f32 %v567, 0.6931472
    %v569 = vsub.f32 %v553, %v566
    %v570 = vsub.f32 %v554, %v568
    %571 = vst.msk [vmem:[#allocation2] sm:$0x1] %vm546, %v569
    %572 = vst.msk [vmem:[#allocation2 + $0x1] sm:$0x1] %vm546, %v570
    %vm573 = vcmask 124929
    %574 = vst.msk [vmem:[#allocation4 - $0x1] sm:$0x6] %vm573, %v498
    %575 = vst.msk [vmem:[#allocation4 + $0x1] sm:$0x6] %vm573, %v530
    // Predicated region
    $region30: #{tpu_custom_call.1} parent=1 // pred_check
      _
    $region31: #{tpu_custom_call.1} parent=1 // pred_check_branch
      %577 = sbr.rel (0) target = $region33
    $region32: #{tpu_custom_call.1} parent=1 // pred_region
      %579 = vsyncadd [#allocation3], 0
      %s580 = sshll.u32 [#allocation2], 4
      %s581 = int_to_ptr.vmem [resolvable:$true] %s580
      %s582 = sshll.u32 %s7, 4
      %s583 = int_to_ptr.hbm [resolvable:$true] %s582
      %588 = dma.vmem_to_hbm [thread:$0]  %s581, 32, %s583, [#allocation3], 16, 16, 1
    $region33: #{tpu_custom_call.1} parent=1 // pred_fallthru
      _
    // Predicated region
    $region34: #{tpu_custom_call.1} parent=1 // pred_check
      _
    $region35: #{tpu_custom_call.1} parent=1 // pred_check_branch
      %590 = sbr.rel (0) target = $region37
    $region36: #{tpu_custom_call.1} parent=1 // pred_region
      %592 = vsyncadd [#allocation5], 0
      %s593 = sshll.u32 [#allocation4], 4
      %s594 = int_to_ptr.vmem [resolvable:$true] %s593
      %s595 = sshll.u32 %s8, 4
      %s596 = int_to_ptr.hbm [resolvable:$true] %s595
      %601 = dma.vmem_to_hbm [thread:$0]  %s594, 64, %s596, [#allocation5], 32, 32, 2
    $region37: #{tpu_custom_call.1} parent=1 // pred_fallthru
      _
    // Predicated region
    $region38: #{tpu_custom_call.1} parent=1 // pred_check
      _
    $region39: #{tpu_custom_call.1} parent=1 // pred_check_branch
      %603 = sbr.rel (0) target = $region41
    $region40: #{tpu_custom_call.1} parent=1 // pred_region
      %605 = dma.done [#allocation3], 32
    $region41: #{tpu_custom_call.1} parent=1 // pred_fallthru
      _
    // Predicated region
    $region42: #{tpu_custom_call.1} parent=1 // pred_check
      _
    $region43: #{tpu_custom_call.1} parent=1 // pred_check_branch
      %607 = sbr.rel (0) target = $region45
    $region44: #{tpu_custom_call.1} parent=1 // pred_region
      %609 = dma.done [#allocation5], 64
    $region45: #{tpu_custom_call.1} parent=1 // pred_fallthru
      _
    %610 = vsyncpa [#allocation3], 1
    %611 = vsyncpa [#allocation5], 1

</llo_original>
